<compile_context>
chip_gen: v7x
topology: tpu7x:2x2x1
jax: 0.10.0
libtpu: 0.0.40
codegen_flags: <defaults>
</compile_context>

<pallas_src>
import jax
import jax.numpy as jnp
from jax.experimental import pallas as pl
from jax.experimental.pallas import tpu as pltpu

HID = 64          # hidden width of each MLP
FUSE = 2 * HID    # 128 fused rows for layer 1: f-half = rows [0,64), g-half = [64,128)
NCOL = 9          # feature rows of x: [x_t, w_t, u_t, f_U, f_L, g_U, g_L, fB_U, fB_L]


# --------------------------------------------------------------------------- kernel

def dynamics_kernel(x_ref, w1_ref, w2f_ref, w2g_ref, w3f_ref, w3g_ref,
                    w4f_ref, w4g_ref, bias_ref, out_ref):
    x = x_ref[...]                                  # (9, TB) f32, batch in lanes

    b1  = bias_ref[:, 0:1]                          # (128, 1)
    b2f = bias_ref[0:HID, 1:2]                      # (64, 1)
    b2g = bias_ref[HID:, 1:2]
    b3f = bias_ref[0:HID, 2:3]
    b3g = bias_ref[HID:, 2:3]
    b4f = bias_ref[0:1, 3:4]                        # (1, 1)
    b4g = bias_ref[1:2, 3:4]

    # Fused layer 1: (128, 9) @ (9, TB) -> (128, TB).  W1 routes x rows [0,1,3,4]
    # into the f-half and [0,1,5,6] into the g-half; both halves use Sigmoid.
    h1 = jnp.dot(w1_ref[...], x, preferred_element_type=jnp.float32) + b1
    h1 = jax.nn.sigmoid(h1)

    # Sublane-aligned split into the two 64-row halves; bf16 for the MXU.
    hf = h1[0:HID, :].astype(jnp.bfloat16)          # (64, TB)
    hg = h1[HID:, :].astype(jnp.bfloat16)

    # Layer 2: tanh only on f rows, relu only on g rows.
    zf = jnp.dot(w2f_ref[...], hf, preferred_element_type=jnp.float32) + b2f
    zg = jnp.dot(w2g_ref[...], hg, preferred_element_type=jnp.float32) + b2g
    hf = jnp.tanh(zf).astype(jnp.bfloat16)
    hg = jnp.maximum(zg, 0.0).astype(jnp.bfloat16)

    # Layer 3.
    zf = jnp.dot(w3f_ref[...], hf, preferred_element_type=jnp.float32) + b3f
    zg = jnp.dot(w3g_ref[...], hg, preferred_element_type=jnp.float32) + b3g
    hf = jnp.tanh(zf)                               # (64, TB) f32
    hg = jnp.maximum(zg, 0.0)

    # Output layer (f32): (1, 64) @ (64, TB) -> (1, TB).
    f_out = jnp.dot(w4f_ref[...], hf, preferred_element_type=jnp.float32) + b4f
    g_out = jnp.dot(w4g_ref[...], hg, preferred_element_type=jnp.float32) + b4g
    t_f = jnp.tanh(f_out)
    t_g = jnp.tanh(g_out)

    u_t = x[2:3, :]
    f_U = x[3:4, :]
    f_L = x[4:5, :]
    g_U = x[5:6, :]
    g_L = x[6:7, :]

    f_part = (f_U - f_L) * 0.5 * t_f + (f_U + f_L) * 0.5
    g_part = (g_U - g_L) * 0.5 * t_g + (g_U + g_L) * 0.5
    # einsum('bij,bj->bi') with n = m = 1 reduces to an elementwise multiply.
    out_ref[...] = f_part + g_part * u_t            # (1, TB) lane-dense store


# --------------------------------------------------------------------------- params

def init_linear(key, in_dim, out_dim):
    """PyTorch-style Linear init: U(-1/sqrt(fan_in), 1/sqrt(fan_in))."""
    kw, kb = jax.random.split(key)
    bound = 1.0 / (in_dim ** 0.5)
    w = jax.random.uniform(kw, (in_dim, out_dim), jnp.float32, -bound, bound)
    b = jax.random.uniform(kb, (1, out_dim), jnp.float32, -bound, bound)
    return w, b


def make_params(seed=0):
    key = jax.random.PRNGKey(seed)
    keys = jax.random.split(key, 8)
    fw1, fb1 = init_linear(keys[0], 4, HID)
    fw2, fb2 = init_linear(keys[1], HID, HID)
    fw3, fb3 = init_linear(keys[2], HID, HID)
    fw4, fb4 = init_linear(keys[3], HID, 1)
    gw1, gb1 = init_linear(keys[4], 4, HID)
    gw2, gb2 = init_linear(keys[5], HID, HID)
    gw3, gb3 = init_linear(keys[6], HID, HID)
    gw4, gb4 = init_linear(keys[7], HID, 1)
    return (fw1, fb1, fw2, fb2, fw3, fb3, fw4, fb4,
            gw1, gb1, gw2, gb2, gw3, gb3, gw4, gb4)


def pack_params(params):
    """Host-side packing into feature-major (transposed) weights for the kernel."""
    (fw1, fb1, fw2, fb2, fw3, fb3, fw4, fb4,
     gw1, gb1, gw2, gb2, gw3, gb3, gw4, gb4) = params

    # W1^T: (128, 9).  f inputs = x rows [0,1,3,4], g inputs = x rows [0,1,5,6].
    W1T = jnp.zeros((FUSE, NCOL), jnp.float32)
    W1T = W1T.at[:HID, 0].set(fw1[0]).at[:HID, 1].set(fw1[1])
    W1T = W1T.at[:HID, 3].set(fw1[2]).at[:HID, 4].set(fw1[3])
    W1T = W1T.at[HID:, 0].set(gw1[0]).at[HID:, 1].set(gw1[1])
    W1T = W1T.at[HID:, 5].set(gw1[2]).at[HID:, 6].set(gw1[3])

    W2fT = fw2.T.astype(jnp.bfloat16)               # (64, 64)
    W2gT = gw2.T.astype(jnp.bfloat16)
    W3fT = fw3.T.astype(jnp.bfloat16)
    W3gT = gw3.T.astype(jnp.bfloat16)
    W4fT = fw4.T.astype(jnp.float32)                # (1, 64)
    W4gT = gw4.T.astype(jnp.float32)

    # Bias slab (128, 8): column k = biases of layer k+1 (hidden unit on sublanes).
    bias = jnp.zeros((FUSE, 8), jnp.float32)
    bias = bias.at[:HID, 0].set(fb1[0]).at[HID:, 0].set(gb1[0])
    bias = bias.at[:HID, 1].set(fb2[0]).at[HID:, 1].set(gb2[0])
    bias = bias.at[:HID, 2].set(fb3[0]).at[HID:, 2].set(gb3[0])
    bias = bias.at[0, 3].set(fb4[0, 0]).at[1, 3].set(gb4[0, 0])
    return W1T, W2fT, W2gT, W3fT, W3gT, W4fT, W4gT, bias


# --------------------------------------------------------------------------- wrapper

def _round_up(n, m):
    return (n + m - 1) // m * m


def dynamics_forward_fm(xt, packed, *, max_tile=2048):
    """Feature-major entry point: xt (9, B) float32 -> (1, B) float32."""
    assert xt.ndim == 2 and xt.shape[0] == NCOL, "kernel assumes n = m = 1 (9 features)"
    B = xt.shape[1]
    W1T, W2fT, W2gT, W3fT, W3gT, W4fT, W4gT, bias = packed

    if B <= 256:
        TB = B                          # single full-extent block (always legal)
    else:
        # >= 2 grid steps so "parallel" shards across v7x's two TensorCores;
        # a lane-dim block smaller than B must be a multiple of 128.
        TB = min(max_tile, _round_up(pl.cdiv(B, 2), 128))
    grid = (pl.cdiv(B, TB),)            # partial last block handled by Pallas (no host pad)

    weight_bytes = sum(int(a.size) * a.dtype.itemsize
                       for a in (W1T, W2fT, W2gT, W3fT, W3gT, W4fT, W4gT, bias))
    cost = pl.CostEstimate(
        flops=int(2 * B * (NCOL * FUSE + 2 * 2 * HID * HID + 2 * HID)),
        transcendentals=int(B * (FUSE + 2 * HID + 2)),
        bytes_accessed=int(B * (NCOL + 1) * 4 + weight_bytes),
    )

    out = pl.pallas_call(
        dynamics_kernel,
        out_shape=jax.ShapeDtypeStruct((1, B), jnp.float32),
        grid_spec=pltpu.PrefetchScalarGridSpec(
            num_scalar_prefetch=0,
            grid=grid,
            in_specs=[
                pl.BlockSpec((NCOL, TB), lambda i: (0, i)),    # x^T tile (pipelined, lane-dense)
                pl.BlockSpec((FUSE, NCOL), lambda i: (0, 0)),  # W1^T   (resident)
                pl.BlockSpec((HID, HID), lambda i: (0, 0)),    # W2f^T  (resident, bf16)
                pl.BlockSpec((HID, HID), lambda i: (0, 0)),    # W2g^T
                pl.BlockSpec((HID, HID), lambda i: (0, 0)),    # W3f^T
                pl.BlockSpec((HID, HID), lambda i: (0, 0)),    # W3g^T
                pl.BlockSpec((1, HID), lambda i: (0, 0)),      # W4f^T
                pl.BlockSpec((1, HID), lambda i: (0, 0)),      # W4g^T
                pl.BlockSpec((FUSE, 8), lambda i: (0, 0)),     # bias slab
            ],
            out_specs=pl.BlockSpec((1, TB), lambda i: (0, i)),
        ),
        compiler_params=pltpu.CompilerParams(
            dimension_semantics=("parallel",),
            vmem_limit_bytes=32 * 1024 * 1024,   # raises v5e's 16 MiB scoped default
        ),
        cost_estimate=cost,
    )(xt, W1T, W2fT, W2gT, W3fT, W3gT, W4fT, W4gT, bias)
    return out


def dynamics_forward(x, packed, **kw):
    """Row-major entry matching the PyTorch module: x (B, 9) -> (B, 1).
    Does one upstream transpose; produce x feature-major and call
    dynamics_forward_fm directly to avoid it."""
    assert x.ndim == 2 and x.shape[1] == NCOL
    return dynamics_forward_fm(x.T, packed, **kw).T


# --------------------------------------------------------------------------- reference

def dynamics_forward_ref(x, params, *, match_kernel=True):
    """Pure-JAX reference mirroring the PyTorch forward.  With match_kernel=True the
    hidden layer-2/3 weights and their activation inputs are rounded to bf16 exactly
    as the kernel does, so the comparison stays tight."""
    (fw1, fb1, fw2, fb2, fw3, fb3, fw4, fb4,
     gw1, gb1, gw2, gb2, gw3, gb3, gw4, gb4) = params

    def q(a):
        return a.astype(jnp.bfloat16).astype(jnp.float32) if match_kernel else a

    f_in = jnp.concatenate([x[:, 0:2], x[:, 3:5]], axis=1)
    g_in = jnp.concatenate([x[:, 0:2], x[:, 5:7]], axis=1)

    h = jax.nn.sigmoid(f_in @ fw1 + fb1)
    h = jnp.tanh(q(h) @ q(fw2) + fb2)
    h = jnp.tanh(q(h) @ q(fw3) + fb3)
    f_out = h @ fw4 + fb4
    f_U, f_L = x[:, 3:4], x[:, 4:5]
    f_part = (f_U - f_L) / 2 * jnp.tanh(f_out) + (f_U + f_L) / 2

    h = jax.nn.sigmoid(g_in @ gw1 + gb1)
    h = jax.nn.relu(q(h) @ q(gw2) + gb2)
    h = jax.nn.relu(q(h) @ q(gw3) + gb3)
    g_out = h @ gw4 + gb4
    g_U, g_L = x[:, 5:6], x[:, 6:7]
    g_part = (g_U - g_L) / 2 * jnp.tanh(g_out) + (g_U + g_L) / 2

    u_t = x[:, 2:3]
    g_matrix = g_part.reshape(-1, 1, 1)
    g_u_part = jnp.einsum('bij,bj->bi', g_matrix, u_t)
    return f_part + g_u_part


# --------------------------------------------------------------------------- main

if __name__ == "__main__":
    params = make_params(seed=0)
    packed = pack_params(params)

    key = jax.random.PRNGKey(0)
    # 8: tiny single block; 37: odd single block; 300: grid of 2 + partial last block.
    for B in (8, 37, 300):
        kx, key = jax.random.split(key)
        x = jax.random.normal(kx, (B, NCOL), dtype=jnp.float32)

        out = dynamics_forward(x, packed)
        out = jax.block_until_ready(out)

        ref = dynamics_forward_ref(x, params)
        assert out.shape == (B, 1)
        err = float(jnp.max(jnp.abs(out - ref)))
        assert err < 1e-3, (B, err)

    print("KERNEL_OK")
</pallas_src>

<mosaic_0001>
module attributes {stable_mosaic.version = 11 : i64} {
  func.func @dynamics_kernel(%arg0: i32, %arg1: memref<9x8xf32, #tpu.memory_space<vmem>>, %arg2: memref<128x9xf32, #tpu.memory_space<vmem>>, %arg3: memref<64x64xbf16, #tpu.memory_space<vmem>>, %arg4: memref<64x64xbf16, #tpu.memory_space<vmem>>, %arg5: memref<64x64xbf16, #tpu.memory_space<vmem>>, %arg6: memref<64x64xbf16, #tpu.memory_space<vmem>>, %arg7: memref<1x64xf32, #tpu.memory_space<vmem>>, %arg8: memref<1x64xf32, #tpu.memory_space<vmem>>, %arg9: memref<128x8xf32, #tpu.memory_space<vmem>>, %arg10: memref<1x8xf32, #tpu.memory_space<vmem>>) attributes {dimension_semantics = [#tpu.dimension_semantics<parallel>], iteration_bounds = array<i64: 1>, scalar_prefetch = 0 : i64, scratch_operands = 0 : i64, tpu.core_type = #tpu.core_type<tc>, window_params = [{transform_indices = @transform_0, window_bounds = array<i64: 9, 8>}, {pipeline_mode = #tpu.pipeline_mode<synchronous>, transform_indices = @transform_1, window_bounds = array<i64: 128, 9>}, {pipeline_mode = #tpu.pipeline_mode<synchronous>, transform_indices = @transform_2, window_bounds = array<i64: 64, 64>}, {pipeline_mode = #tpu.pipeline_mode<synchronous>, transform_indices = @transform_3, window_bounds = array<i64: 64, 64>}, {pipeline_mode = #tpu.pipeline_mode<synchronous>, transform_indices = @transform_4, window_bounds = array<i64: 64, 64>}, {pipeline_mode = #tpu.pipeline_mode<synchronous>, transform_indices = @transform_5, window_bounds = array<i64: 64, 64>}, {pipeline_mode = #tpu.pipeline_mode<synchronous>, transform_indices = @transform_6, window_bounds = array<i64: 1, 64>}, {pipeline_mode = #tpu.pipeline_mode<synchronous>, transform_indices = @transform_7, window_bounds = array<i64: 1, 64>}, {pipeline_mode = #tpu.pipeline_mode<synchronous>, transform_indices = @transform_8, window_bounds = array<i64: 128, 8>}, {transform_indices = @transform_9, window_bounds = array<i64: 1, 8>}]} {
    %c0 = arith.constant 0 : index
    %c0_0 = arith.constant 0 : index
    %0 = vector.load %arg1[%c0, %c0_0] : memref<9x8xf32, #tpu.memory_space<vmem>>, vector<9x8xf32>
    %c0_1 = arith.constant 0 : index
    %c0_2 = arith.constant 0 : index
    %1 = vector.load %arg9[%c0_1, %c0_2] : memref<128x8xf32, #tpu.memory_space<vmem>>, vector<128x1xf32>
    %c0_3 = arith.constant 0 : index
    %c1 = arith.constant 1 : index
    %2 = vector.load %arg9[%c0_3, %c1] : memref<128x8xf32, #tpu.memory_space<vmem>>, vector<64x1xf32>
    %c64 = arith.constant 64 : index
    %c1_4 = arith.constant 1 : index
    %3 = vector.load %arg9[%c64, %c1_4] : memref<128x8xf32, #tpu.memory_space<vmem>>, vector<64x1xf32>
    %c0_5 = arith.constant 0 : index
    %c2 = arith.constant 2 : index
    %4 = vector.load %arg9[%c0_5, %c2] : memref<128x8xf32, #tpu.memory_space<vmem>>, vector<64x1xf32>
    %c64_6 = arith.constant 64 : index
    %c2_7 = arith.constant 2 : index
    %5 = vector.load %arg9[%c64_6, %c2_7] : memref<128x8xf32, #tpu.memory_space<vmem>>, vector<64x1xf32>
    %c0_8 = arith.constant 0 : index
    %c3 = arith.constant 3 : index
    %6 = vector.load %arg9[%c0_8, %c3] : memref<128x8xf32, #tpu.memory_space<vmem>>, vector<1x1xf32>
    %c1_9 = arith.constant 1 : index
    %c3_10 = arith.constant 3 : index
    %7 = vector.load %arg9[%c1_9, %c3_10] : memref<128x8xf32, #tpu.memory_space<vmem>>, vector<1x1xf32>
    %c0_11 = arith.constant 0 : index
    %c0_12 = arith.constant 0 : index
    %8 = vector.load %arg2[%c0_11, %c0_12] : memref<128x9xf32, #tpu.memory_space<vmem>>, vector<128x9xf32>
    %cst = arith.constant dense<0.000000e+00> : vector<128x8xf32>
    %9 = tpu.matmul %8, %0, %cst {dimension_numbers = #tpu.dot_dimension_numbers<[1], [0], [0], [1], [0, 0, 1, 1], [], []>} : vector<128x9xf32>, vector<9x8xf32>, vector<128x8xf32> -> vector<128x8xf32>
    %10 = vector.broadcast %1 : vector<128x1xf32> to vector<128x8xf32>
    %11 = arith.addf %9, %10 : vector<128x8xf32>
    %12 = arith.negf %11 : vector<128x8xf32>
    %13 = math.exp %12 : vector<128x8xf32>
    %cst_13 = arith.constant 1.000000e+00 : f32
    %14 = vector.broadcast %cst_13 : f32 to vector<128x8xf32>
    %15 = arith.addf %14, %13 : vector<128x8xf32>
    %16 = arith.divf %14, %15 : vector<128x8xf32>
    %17 = vector.extract_strided_slice %16 {offsets = [0, 0], sizes = [64, 8], strides = [1, 1]} : vector<128x8xf32> to vector<64x8xf32>
    %18 = arith.truncf %17 : vector<64x8xf32> to vector<64x8xbf16>
    %19 = vector.extract_strided_slice %16 {offsets = [64, 0], sizes = [64, 8], strides = [1, 1]} : vector<128x8xf32> to vector<64x8xf32>
    %20 = arith.truncf %19 : vector<64x8xf32> to vector<64x8xbf16>
    %c0_14 = arith.constant 0 : index
    %c0_15 = arith.constant 0 : index
    %21 = vector.load %arg3[%c0_14, %c0_15] : memref<64x64xbf16, #tpu.memory_space<vmem>>, vector<64x64xbf16>
    %cst_16 = arith.constant dense<0.000000e+00> : vector<64x8xf32>
    %22 = tpu.matmul %21, %18, %cst_16 {dimension_numbers = #tpu.dot_dimension_numbers<[1], [0], [0], [1], [0, 0, 1, 1], [], []>} : vector<64x64xbf16>, vector<64x8xbf16>, vector<64x8xf32> -> vector<64x8xf32>
    %23 = vector.broadcast %2 : vector<64x1xf32> to vector<64x8xf32>
    %24 = arith.addf %22, %23 : vector<64x8xf32>
    %c0_17 = arith.constant 0 : index
    %c0_18 = arith.constant 0 : index
    %25 = vector.load %arg4[%c0_17, %c0_18] : memref<64x64xbf16, #tpu.memory_space<vmem>>, vector<64x64xbf16>
    %cst_19 = arith.constant dense<0.000000e+00> : vector<64x8xf32>
    %26 = tpu.matmul %25, %20, %cst_19 {dimension_numbers = #tpu.dot_dimension_numbers<[1], [0], [0], [1], [0, 0, 1, 1], [], []>} : vector<64x64xbf16>, vector<64x8xbf16>, vector<64x8xf32> -> vector<64x8xf32>
    %27 = vector.broadcast %3 : vector<64x1xf32> to vector<64x8xf32>
    %28 = arith.addf %26, %27 : vector<64x8xf32>
    %29 = math.tanh %24 : vector<64x8xf32>
    %30 = arith.truncf %29 : vector<64x8xf32> to vector<64x8xbf16>
    %cst_20 = arith.constant 0.000000e+00 : f32
    %31 = vector.broadcast %cst_20 : f32 to vector<64x8xf32>
    %32 = arith.maximumf %28, %31 : vector<64x8xf32>
    %33 = arith.truncf %32 : vector<64x8xf32> to vector<64x8xbf16>
    %c0_21 = arith.constant 0 : index
    %c0_22 = arith.constant 0 : index
    %34 = vector.load %arg5[%c0_21, %c0_22] : memref<64x64xbf16, #tpu.memory_space<vmem>>, vector<64x64xbf16>
    %cst_23 = arith.constant dense<0.000000e+00> : vector<64x8xf32>
    %35 = tpu.matmul %34, %30, %cst_23 {dimension_numbers = #tpu.dot_dimension_numbers<[1], [0], [0], [1], [0, 0, 1, 1], [], []>} : vector<64x64xbf16>, vector<64x8xbf16>, vector<64x8xf32> -> vector<64x8xf32>
    %36 = vector.broadcast %4 : vector<64x1xf32> to vector<64x8xf32>
    %37 = arith.addf %35, %36 : vector<64x8xf32>
    %c0_24 = arith.constant 0 : index
    %c0_25 = arith.constant 0 : index
    %38 = vector.load %arg6[%c0_24, %c0_25] : memref<64x64xbf16, #tpu.memory_space<vmem>>, vector<64x64xbf16>
    %cst_26 = arith.constant dense<0.000000e+00> : vector<64x8xf32>
    %39 = tpu.matmul %38, %33, %cst_26 {dimension_numbers = #tpu.dot_dimension_numbers<[1], [0], [0], [1], [0, 0, 1, 1], [], []>} : vector<64x64xbf16>, vector<64x8xbf16>, vector<64x8xf32> -> vector<64x8xf32>
    %40 = vector.broadcast %5 : vector<64x1xf32> to vector<64x8xf32>
    %41 = arith.addf %39, %40 : vector<64x8xf32>
    %42 = math.tanh %37 : vector<64x8xf32>
    %cst_27 = arith.constant 0.000000e+00 : f32
    %43 = vector.broadcast %cst_27 : f32 to vector<64x8xf32>
    %44 = arith.maximumf %41, %43 : vector<64x8xf32>
    %c0_28 = arith.constant 0 : index
    %c0_29 = arith.constant 0 : index
    %45 = vector.load %arg7[%c0_28, %c0_29] : memref<1x64xf32, #tpu.memory_space<vmem>>, vector<1x64xf32>
    %cst_30 = arith.constant dense<0.000000e+00> : vector<1x8xf32>
    %46 = tpu.matmul %45, %42, %cst_30 {dimension_numbers = #tpu.dot_dimension_numbers<[1], [0], [0], [1], [0, 0, 1, 1], [], []>} : vector<1x64xf32>, vector<64x8xf32>, vector<1x8xf32> -> vector<1x8xf32>
    %47 = vector.broadcast %6 : vector<1x1xf32> to vector<1x8xf32>
    %48 = arith.addf %46, %47 : vector<1x8xf32>
    %c0_31 = arith.constant 0 : index
    %c0_32 = arith.constant 0 : index
    %49 = vector.load %arg8[%c0_31, %c0_32] : memref<1x64xf32, #tpu.memory_space<vmem>>, vector<1x64xf32>
    %cst_33 = arith.constant dense<0.000000e+00> : vector<1x8xf32>
    %50 = tpu.matmul %49, %44, %cst_33 {dimension_numbers = #tpu.dot_dimension_numbers<[1], [0], [0], [1], [0, 0, 1, 1], [], []>} : vector<1x64xf32>, vector<64x8xf32>, vector<1x8xf32> -> vector<1x8xf32>
    %51 = vector.broadcast %7 : vector<1x1xf32> to vector<1x8xf32>
    %52 = arith.addf %50, %51 : vector<1x8xf32>
    %53 = math.tanh %48 : vector<1x8xf32>
    %54 = math.tanh %52 : vector<1x8xf32>
    %55 = vector.extract_strided_slice %0 {offsets = [2, 0], sizes = [1, 8], strides = [1, 1]} : vector<9x8xf32> to vector<1x8xf32>
    %56 = vector.extract_strided_slice %0 {offsets = [3, 0], sizes = [1, 8], strides = [1, 1]} : vector<9x8xf32> to vector<1x8xf32>
    %57 = vector.extract_strided_slice %0 {offsets = [4, 0], sizes = [1, 8], strides = [1, 1]} : vector<9x8xf32> to vector<1x8xf32>
    %58 = vector.extract_strided_slice %0 {offsets = [5, 0], sizes = [1, 8], strides = [1, 1]} : vector<9x8xf32> to vector<1x8xf32>
    %59 = vector.extract_strided_slice %0 {offsets = [6, 0], sizes = [1, 8], strides = [1, 1]} : vector<9x8xf32> to vector<1x8xf32>
    %60 = arith.subf %56, %57 : vector<1x8xf32>
    %cst_34 = arith.constant 5.000000e-01 : f32
    %61 = vector.broadcast %cst_34 : f32 to vector<1x8xf32>
    %62 = arith.mulf %60, %61 : vector<1x8xf32>
    %63 = arith.mulf %62, %53 : vector<1x8xf32>
    %64 = arith.addf %56, %57 : vector<1x8xf32>
    %cst_35 = arith.constant 5.000000e-01 : f32
    %65 = vector.broadcast %cst_35 : f32 to vector<1x8xf32>
    %66 = arith.mulf %64, %65 : vector<1x8xf32>
    %67 = arith.addf %63, %66 : vector<1x8xf32>
    %68 = arith.subf %58, %59 : vector<1x8xf32>
    %cst_36 = arith.constant 5.000000e-01 : f32
    %69 = vector.broadcast %cst_36 : f32 to vector<1x8xf32>
    %70 = arith.mulf %68, %69 : vector<1x8xf32>
    %71 = arith.mulf %70, %54 : vector<1x8xf32>
    %72 = arith.addf %58, %59 : vector<1x8xf32>
    %cst_37 = arith.constant 5.000000e-01 : f32
    %73 = vector.broadcast %cst_37 : f32 to vector<1x8xf32>
    %74 = arith.mulf %72, %73 : vector<1x8xf32>
    %75 = arith.addf %71, %74 : vector<1x8xf32>
    %76 = arith.mulf %75, %55 : vector<1x8xf32>
    %77 = arith.addf %67, %76 : vector<1x8xf32>
    %c0_38 = arith.constant 0 : index
    %c0_39 = arith.constant 0 : index
    %78 = vector.load %arg10[%c0_38, %c0_39] : memref<1x8xf32, #tpu.memory_space<vmem>>, vector<1x8xf32>
    tpu.vector_store %arg10[%c0_38, %c0_39], %77 {strides = array<i32>} : memref<1x8xf32, #tpu.memory_space<vmem>>, vector<1x8xf32>,
    return
  }
  func.func @transform_0(%arg0: i32) -> (i32, i32) {
    %c0_i32 = arith.constant 0 : i32
    %c0_i32_0 = arith.constant 0 : i32
    return %c0_i32, %arg0 : i32, i32
  }
  func.func @transform_1(%arg0: i32) -> (i32, i32) {
    %c0_i32 = arith.constant 0 : i32
    %c0_i32_0 = arith.constant 0 : i32
    %c0_i32_1 = arith.constant 0 : i32
    return %c0_i32, %c0_i32_0 : i32, i32
  }
  func.func @transform_2(%arg0: i32) -> (i32, i32) {
    %c0_i32 = arith.constant 0 : i32
    %c0_i32_0 = arith.constant 0 : i32
    %c0_i32_1 = arith.constant 0 : i32
    return %c0_i32, %c0_i32_0 : i32, i32
  }
  func.func @transform_3(%arg0: i32) -> (i32, i32) {
    %c0_i32 = arith.constant 0 : i32
    %c0_i32_0 = arith.constant 0 : i32
    %c0_i32_1 = arith.constant 0 : i32
    return %c0_i32, %c0_i32_0 : i32, i32
  }
  func.func @transform_4(%arg0: i32) -> (i32, i32) {
    %c0_i32 = arith.constant 0 : i32
    %c0_i32_0 = arith.constant 0 : i32
    %c0_i32_1 = arith.constant 0 : i32
    return %c0_i32, %c0_i32_0 : i32, i32
  }
  func.func @transform_5(%arg0: i32) -> (i32, i32) {
    %c0_i32 = arith.constant 0 : i32
    %c0_i32_0 = arith.constant 0 : i32
    %c0_i32_1 = arith.constant 0 : i32
    return %c0_i32, %c0_i32_0 : i32, i32
  }
  func.func @transform_6(%arg0: i32) -> (i32, i32) {
    %c0_i32 = arith.constant 0 : i32
    %c0_i32_0 = arith.constant 0 : i32
    %c0_i32_1 = arith.constant 0 : i32
    return %c0_i32, %c0_i32_0 : i32, i32
  }
  func.func @transform_7(%arg0: i32) -> (i32, i32) {
    %c0_i32 = arith.constant 0 : i32
    %c0_i32_0 = arith.constant 0 : i32
    %c0_i32_1 = arith.constant 0 : i32
    return %c0_i32, %c0_i32_0 : i32, i32
  }
  func.func @transform_8(%arg0: i32) -> (i32, i32) {
    %c0_i32 = arith.constant 0 : i32
    %c0_i32_0 = arith.constant 0 : i32
    %c0_i32_1 = arith.constant 0 : i32
    return %c0_i32, %c0_i32_0 : i32, i32
  }
  func.func @transform_9(%arg0: i32) -> (i32, i32) {
    %c0_i32 = arith.constant 0 : i32
    %c0_i32_0 = arith.constant 0 : i32
    return %c0_i32, %arg0 : i32, i32
  }
}

</mosaic_0001>

<llo_original>
// kernel: tpu_custom_call.1
$region0: #{tpu_custom_call.1}
  #allocation0 [shape = 'u32[]', space=smem, size = 0x4, offset = 0x4, fixed_abs, tag = 'smem constant byte address 0x4 - core index']
  #allocation1 [shape = 'u32[144,128]{1,0:T(1,128)}', space=vmem, size = 0x12000, scoped, tag = 'internal scratch']
  %s0 = inlined_call_operand.vmem [shape: f32[9,8], index: 0, kind: input, shape index: {}]
  %s1 = inlined_call_operand.vmem [shape: f32[128,9], index: 1, kind: input, shape index: {}]
  %s2 = inlined_call_operand.vmem [shape: bf16[64,64], index: 2, kind: input, shape index: {}]
  %s3 = inlined_call_operand.vmem [shape: bf16[64,64], index: 3, kind: input, shape index: {}]
  %s4 = inlined_call_operand.vmem [shape: bf16[64,64], index: 4, kind: input, shape index: {}]
  %s5 = inlined_call_operand.vmem [shape: bf16[64,64], index: 5, kind: input, shape index: {}]
  %s6 = inlined_call_operand.vmem [shape: f32[1,64], index: 6, kind: input, shape index: {}]
  %s7 = inlined_call_operand.vmem [shape: f32[1,64], index: 7, kind: input, shape index: {}]
  %s8 = inlined_call_operand.vmem [shape: f32[128,8], index: 8, kind: input, shape index: {}]
  %s9 = inlined_call_operand.hbm [shape: f32[1,8], index: 9, kind: output, shape index: {}]
  %s10 = sld [smem:[#allocation0]]
  $region46: #{tpu_custom_call.1} parent=0
    _
  %s12 = ssub.s32 1, %s10
  %s13 = scalar_select 0, %s12, %s10
  $region1: #{tpu_custom_call.1} parent=0
    #allocation2 [shape = 'u8[512]{0}', space=vmem, size = 0x400, scoped, tag = 'output window, operand 0, single buffered']
    #allocation3 [shape = 's32[1]{0}', space=sflag, size = 0x4, scoped, tag = 'scoped memory for tpu_custom_call.1']
    %14 = vsyncpa [#allocation3], 0
    // Predicated region
    $region2: #{tpu_custom_call.1} parent=1 // pred_check
      _
    $region3: #{tpu_custom_call.1} parent=1 // pred_check_branch
      %16 = sbr.rel (0) target = $region5
    $region4: #{tpu_custom_call.1} parent=1 // pred_region
      _
    $region5: #{tpu_custom_call.1} parent=1 // pred_fallthru
      _
    // Predicated region
    $region6: #{tpu_custom_call.1} parent=1 // pred_check
      _
    $region7: #{tpu_custom_call.1} parent=1 // pred_check_branch
      %18 = sbr.rel (0) target = $region9
    $region8: #{tpu_custom_call.1} parent=1 // pred_region
      _
    $region9: #{tpu_custom_call.1} parent=1 // pred_fallthru
      _
    // Predicated region
    $region10: #{tpu_custom_call.1} parent=1 // pred_check
      _
    $region11: #{tpu_custom_call.1} parent=1 // pred_check_branch
      %20 = sbr.rel (0) target = $region13
    $region12: #{tpu_custom_call.1} parent=1 // pred_region
      _
    $region13: #{tpu_custom_call.1} parent=1 // pred_fallthru
      _
    // Predicated region
    $region14: #{tpu_custom_call.1} parent=1 // pred_check
      _
    $region15: #{tpu_custom_call.1} parent=1 // pred_check_branch
      %22 = sbr.rel (0) target = $region17
    $region16: #{tpu_custom_call.1} parent=1 // pred_region
      _
    $region17: #{tpu_custom_call.1} parent=1 // pred_fallthru
      _
    // Predicated region
    $region18: #{tpu_custom_call.1} parent=1 // pred_check
      _
    $region19: #{tpu_custom_call.1} parent=1 // pred_check_branch
      %24 = sbr.rel (0) target = $region21
    $region20: #{tpu_custom_call.1} parent=1 // pred_region
      _
    $region21: #{tpu_custom_call.1} parent=1 // pred_fallthru
      _
    // Predicated region
    $region22: #{tpu_custom_call.1} parent=1 // pred_check
      _
    $region23: #{tpu_custom_call.1} parent=1 // pred_check_branch
      %26 = sbr.rel (0) target = $region25
    $region24: #{tpu_custom_call.1} parent=1 // pred_region
      _
    $region25: #{tpu_custom_call.1} parent=1 // pred_fallthru
      _
    // Predicated region
    $region26: #{tpu_custom_call.1} parent=1 // pred_check
      _
    $region27: #{tpu_custom_call.1} parent=1 // pred_check_branch
      %28 = sbr.rel (0) target = $region29
    $region28: #{tpu_custom_call.1} parent=1 // pred_region
      _
    $region29: #{tpu_custom_call.1} parent=1 // pred_fallthru
      _
    // Predicated region
    $region30: #{tpu_custom_call.1} parent=1 // pred_check
      _
    $region31: #{tpu_custom_call.1} parent=1 // pred_check_branch
      %30 = sbr.rel (0) target = $region33
    $region32: #{tpu_custom_call.1} parent=1 // pred_region
      _
    $region33: #{tpu_custom_call.1} parent=1 // pred_fallthru
      _
    // Predicated region
    $region34: #{tpu_custom_call.1} parent=1 // pred_check
      _
    $region35: #{tpu_custom_call.1} parent=1 // pred_check_branch
      %32 = sbr.rel (0) target = $region37
    $region36: #{tpu_custom_call.1} parent=1 // pred_region
      _
    $region37: #{tpu_custom_call.1} parent=1 // pred_fallthru
      _
    %v34 = vld [vmem:[%s0] sm:$0xff]
    %v35 = vld [vmem:[%s0 + $0x8] sm:$0x1]
    %v36 = vld [vmem:[%s8] sm:$0xff]
    %v37 = vld [vmem:[%s8 + $0x8] sm:$0xff]
    %v38 = vld [vmem:[%s8 + $0x10] sm:$0xff]
    %v39 = vld [vmem:[%s8 + $0x18] sm:$0xff]
    %v40 = vld [vmem:[%s8 + $0x20] sm:$0xff]
    %v41 = vld [vmem:[%s8 + $0x28] sm:$0xff]
    %v42 = vld [vmem:[%s8 + $0x30] sm:$0xff]
    %v43 = vld [vmem:[%s8 + $0x38] sm:$0xff]
    %v44 = vld [vmem:[%s8 + $0x40] sm:$0xff]
    %v45 = vld [vmem:[%s8 + $0x48] sm:$0xff]
    %v46 = vld [vmem:[%s8 + $0x50] sm:$0xff]
    %v47 = vld [vmem:[%s8 + $0x58] sm:$0xff]
    %v48 = vld [vmem:[%s8 + $0x60] sm:$0xff]
    %v49 = vld [vmem:[%s8 + $0x68] sm:$0xff]
    %v50 = vld [vmem:[%s8 + $0x70] sm:$0xff]
    %v51 = vld [vmem:[%s8 + $0x78] sm:$0xff]
    %v52 = vld [vmem:[%s8] sm:$0x1]
    %v53 = vld [vmem:[%s8 + $0x1] sm:$0x1]
    %v54 = vld [vmem:[%s1] sm:$0xff]
    %v55 = vld [vmem:[%s1 + $0x8] sm:$0xff]
    %v56 = vld [vmem:[%s1 + $0x10] sm:$0xff]
    %v57 = vld [vmem:[%s1 + $0x18] sm:$0xff]
    %v58 = vld [vmem:[%s1 + $0x20] sm:$0xff]
    %v59 = vld [vmem:[%s1 + $0x28] sm:$0xff]
    %v60 = vld [vmem:[%s1 + $0x30] sm:$0xff]
    %v61 = vld [vmem:[%s1 + $0x38] sm:$0xff]
    %v62 = vld [vmem:[%s1 + $0x40] sm:$0xff]
    %v63 = vld [vmem:[%s1 + $0x48] sm:$0xff]
    %v64 = vld [vmem:[%s1 + $0x50] sm:$0xff]
    %v65 = vld [vmem:[%s1 + $0x58] sm:$0xff]
    %v66 = vld [vmem:[%s1 + $0x60] sm:$0xff]
    %v67 = vld [vmem:[%s1 + $0x68] sm:$0xff]
    %v68 = vld [vmem:[%s1 + $0x70] sm:$0xff]
    %v69 = vld [vmem:[%s1 + $0x78] sm:$0xff]
    %71 = vset.pattern.permute.xlu0 0
    %72 = vperm.xlu0 %71, %v36
    %v73 = vpop.permute.xlu0 %72
    %76 = vset.pattern.permute.xlu0 0
    %77 = vperm.xlu0 %76, %v37
    %v78 = vpop.permute.xlu0 %77
    %81 = vset.pattern.permute.xlu0 0
    %82 = vperm.xlu0 %81, %v38
    %v83 = vpop.permute.xlu0 %82
    %86 = vset.pattern.permute.xlu0 0
    %87 = vperm.xlu0 %86, %v39
    %v88 = vpop.permute.xlu0 %87
    %91 = vset.pattern.permute.xlu0 0
    %92 = vperm.xlu0 %91, %v40
    %v93 = vpop.permute.xlu0 %92
    %96 = vset.pattern.permute.xlu0 0
    %97 = vperm.xlu0 %96, %v41
    %v98 = vpop.permute.xlu0 %97
    %101 = vset.pattern.permute.xlu0 0
    %102 = vperm.xlu0 %101, %v42
    %v103 = vpop.permute.xlu0 %102
    %106 = vset.pattern.permute.xlu0 0
    %107 = vperm.xlu0 %106, %v43
    %v108 = vpop.permute.xlu0 %107
    %111 = vset.pattern.permute.xlu0 0
    %112 = vperm.xlu0 %111, %v44
    %v113 = vpop.permute.xlu0 %112
    %116 = vset.pattern.permute.xlu0 0
    %117 = vperm.xlu0 %116, %v45
    %v118 = vpop.permute.xlu0 %117
    %121 = vset.pattern.permute.xlu0 0
    %122 = vperm.xlu0 %121, %v46
    %v123 = vpop.permute.xlu0 %122
    %126 = vset.pattern.permute.xlu0 0
    %127 = vperm.xlu0 %126, %v47
    %v128 = vpop.permute.xlu0 %127
    %131 = vset.pattern.permute.xlu0 0
    %132 = vperm.xlu0 %131, %v48
    %v133 = vpop.permute.xlu0 %132
    %136 = vset.pattern.permute.xlu0 0
    %137 = vperm.xlu0 %136, %v49
    %v138 = vpop.permute.xlu0 %137
    %141 = vset.pattern.permute.xlu0 0
    %142 = vperm.xlu0 %141, %v50
    %v143 = vpop.permute.xlu0 %142
    %146 = vset.pattern.permute.xlu0 0
    %147 = vperm.xlu0 %146, %v51
    %v148 = vpop.permute.xlu0 %147
    %vm150 = vcmask 72704
    %v152 = vsel %vm150, %v54, 0
    %v155 = vsel %vm150, %v55, 0
    %v158 = vsel %vm150, %v56, 0
    %v161 = vsel %vm150, %v57, 0
    %v164 = vsel %vm150, %v58, 0
    %v167 = vsel %vm150, %v59, 0
    %v170 = vsel %vm150, %v60, 0
    %v173 = vsel %vm150, %v61, 0
    %v176 = vsel %vm150, %v62, 0
    %v179 = vsel %vm150, %v63, 0
    %v182 = vsel %vm150, %v64, 0
    %v185 = vsel %vm150, %v65, 0
    %v188 = vsel %vm150, %v66, 0
    %v191 = vsel %vm150, %v67, 0
    %v194 = vsel %vm150, %v68, 0
    %v197 = vsel %vm150, %v69, 0
    %vm199 = vcmask 1040384
    %v201 = vsel %vm199, %v35, 0
    %203 = vmatprep.subr.mxu0 0.0
    %204 = vmatpush1.msra.mxu0 %v34
    %205 = vmatprep.subr.mxu0 0.0
    %206 = vmatpush1.msra.mxu0 %v201
    %207 = vmatprep.subr.mxu0 0.0
    %208 = vmatpush1.msra.mxu0 0.0
    %209 = vmatprep.subr.mxu0 0.0
    %210 = vmatpush1.msra.mxu0 0.0
    %211 = vmatprep.subr.mxu0 0.0
    %212 = vmatpush1.msra.mxu0 0.0
    %213 = vmatprep.subr.mxu0 0.0
    %214 = vmatpush1.msra.mxu0 0.0
    %215 = vmatprep.subr.mxu0 0.0
    %216 = vmatpush1.msra.mxu0 0.0
    %217 = vmatprep.subr.mxu0 0.0
    %218 = vmatpush1.msra.mxu0 0.0
    %219 = vmatprep.subr.mxu0 0.0
    %220 = vmatpush1.msra.mxu0 0.0
    %221 = vmatprep.subr.mxu0 0.0
    %222 = vmatpush1.msra.mxu0 0.0
    %223 = vmatprep.subr.mxu0 0.0
    %224 = vmatpush1.msra.mxu0 0.0
    %225 = vmatprep.subr.mxu0 0.0
    %226 = vmatpush1.msra.mxu0 0.0
    %227 = vmatprep.subr.mxu0 0.0
    %228 = vmatpush1.msra.mxu0 0.0
    %229 = vmatprep.subr.mxu0 0.0
    %230 = vmatpush1.msra.mxu0 0.0
    %231 = vmatprep.subr.mxu0 0.0
    %232 = vmatpush1.msra.mxu0 0.0
    %233 = vmatprep.subr.mxu0 0.0
    %234 = vmatpush1.msra.mxu0 0.0
    %235 = vmatprep.subr.mxu0 0.0
    %236 = vmatpush1.msra.mxu0 0.0
    %237 = vmatprep.subr.mxu0 0.0
    %238 = vmatpush1.msra.mxu0 0.0
    %239 = vmatprep.subr.mxu0 0.0
    %240 = vmatpush1.msra.mxu0 0.0
    %241 = vmatprep.subr.mxu0 0.0
    %242 = vmatpush1.msra.mxu0 0.0
    %243 = vmatprep.subr.mxu0 0.0
    %244 = vmatpush1.msra.mxu0 0.0
    %245 = vmatprep.subr.mxu0 0.0
    %246 = vmatpush1.msra.mxu0 0.0
    %247 = vmatprep.subr.mxu0 0.0
    %248 = vmatpush1.msra.mxu0 0.0
    %249 = vmatprep.subr.mxu0 0.0
    %250 = vmatpush1.msra.mxu0 0.0
    %251 = vmatprep.subr.mxu0 0.0
    %252 = vmatpush1.msra.mxu0 0.0
    %253 = vmatprep.subr.mxu0 0.0
    %254 = vmatpush1.msra.mxu0 0.0
    %255 = vmatprep.subr.mxu0 0.0
    %256 = vmatpush1.msra.mxu0 0.0
    %257 = vmatprep.subr.mxu0 0.0
    %258 = vmatpush1.msra.mxu0 0.0
    %259 = vmatprep.subr.mxu0 0.0
    %260 = vmatpush1.msra.mxu0 0.0
    %261 = vmatprep.subr.mxu0 0.0
    %262 = vmatpush1.msra.mxu0 0.0
    %263 = vmatprep.subr.mxu0 0.0
    %264 = vmatpush1.msra.mxu0 0.0
    %265 = vmatprep.subr.mxu0 0.0
    %266 = vmatpush1.msra.mxu0 0.0
    %267 = vmatprep.mubr.f32.mxu0 0.0
    %268 = vmatmul.mubr.f32.gmra.mrb[0].mxu0 %v152
    %v269 = vpop.f32.mrb[0].mxu0
    %v270 = vadd.f32 %v73, %v269
    %v271 = vpop.f32.mrb[0].mxu0
    %272 = vmatprep.mubr.f32.mxu0 0.0
    %273 = vmatmul.mubr.f32.gmra.mrb[0].mxu0 %v155
    %v274 = vpop.f32.mrb[0].mxu0
    %v275 = vadd.f32 %v78, %v274
    %v276 = vpop.f32.mrb[0].mxu0
    %277 = vmatprep.mubr.f32.mxu0 0.0
    %278 = vmatmul.mubr.f32.gmra.mrb[0].mxu0 %v158
    %v279 = vpop.f32.mrb[0].mxu0
    %v280 = vadd.f32 %v83, %v279
    %v281 = vpop.f32.mrb[0].mxu0
    %282 = vmatprep.mubr.f32.mxu0 0.0
    %283 = vmatmul.mubr.f32.gmra.mrb[0].mxu0 %v161
    %v284 = vpop.f32.mrb[0].mxu0
    %v285 = vadd.f32 %v88, %v284
    %v286 = vpop.f32.mrb[0].mxu0
    %287 = vmatprep.mubr.f32.mxu0 0.0
    %288 = vmatmul.mubr.f32.gmra.mrb[0].mxu0 %v164
    %v289 = vpop.f32.mrb[0].mxu0
    %v290 = vadd.f32 %v93, %v289
    %v291 = vpop.f32.mrb[0].mxu0
    %292 = vmatprep.mubr.f32.mxu0 0.0
    %293 = vmatmul.mubr.f32.gmra.mrb[0].mxu0 %v167
    %v294 = vpop.f32.mrb[0].mxu0
    %v295 = vadd.f32 %v98, %v294
    %v296 = vpop.f32.mrb[0].mxu0
    %297 = vmatprep.mubr.f32.mxu0 0.0
    %298 = vmatmul.mubr.f32.gmra.mrb[0].mxu0 %v170
    %v299 = vpop.f32.mrb[0].mxu0
    %v300 = vadd.f32 %v103, %v299
    %v301 = vpop.f32.mrb[0].mxu0
    %302 = vmatprep.mubr.f32.mxu0 0.0
    %303 = vmatmul.mubr.f32.gmra.mrb[0].mxu0 %v173
    %v304 = vpop.f32.mrb[0].mxu0
    %v305 = vadd.f32 %v108, %v304
    %v306 = vpop.f32.mrb[0].mxu0
    %307 = vmatprep.mubr.f32.mxu0 0.0
    %308 = vmatmul.mubr.f32.gmra.mrb[0].mxu0 %v176
    %v309 = vpop.f32.mrb[0].mxu0
    %v310 = vadd.f32 %v113, %v309
    %v311 = vpop.f32.mrb[0].mxu0
    %312 = vmatprep.mubr.f32.mxu0 0.0
    %313 = vmatmul.mubr.f32.gmra.mrb[0].mxu0 %v179
    %v314 = vpop.f32.mrb[0].mxu0
    %v315 = vadd.f32 %v118, %v314
    %v316 = vpop.f32.mrb[0].mxu0
    %317 = vmatprep.mubr.f32.mxu0 0.0
    %318 = vmatmul.mubr.f32.gmra.mrb[0].mxu0 %v182
    %v319 = vpop.f32.mrb[0].mxu0
    %v320 = vadd.f32 %v123, %v319
    %v321 = vpop.f32.mrb[0].mxu0
    %322 = vmatprep.mubr.f32.mxu0 0.0
    %323 = vmatmul.mubr.f32.gmra.mrb[0].mxu0 %v185
    %v324 = vpop.f32.mrb[0].mxu0
    %v325 = vadd.f32 %v128, %v324
    %v326 = vpop.f32.mrb[0].mxu0
    %327 = vmatprep.mubr.f32.mxu0 0.0
    %328 = vmatmul.mubr.f32.gmra.mrb[0].mxu0 %v188
    %v329 = vpop.f32.mrb[0].mxu0
    %v330 = vadd.f32 %v133, %v329
    %v331 = vpop.f32.mrb[0].mxu0
    %332 = vmatprep.mubr.f32.mxu0 0.0
    %333 = vmatmul.mubr.f32.gmra.mrb[0].mxu0 %v191
    %v334 = vpop.f32.mrb[0].mxu0
    %v335 = vadd.f32 %v138, %v334
    %v336 = vpop.f32.mrb[0].mxu0
    %337 = vmatprep.mubr.f32.mxu0 0.0
    %338 = vmatmul.mubr.f32.gmra.mrb[0].mxu0 %v194
    %v339 = vpop.f32.mrb[0].mxu0
    %v340 = vadd.f32 %v143, %v339
    %v341 = vpop.f32.mrb[0].mxu0
    %342 = vmatprep.mubr.f32.mxu0 0.0
    %343 = vmatmul.mubr.f32.gmra.mrb[0].mxu0 %v197
    %v344 = vpop.f32.mrb[0].mxu0
    %v345 = vadd.f32 %v148, %v344
    %v346 = vpop.f32.mrb[0].mxu0
    %347 = vdwg.mxu0
    %v348 = vxor.u32 %v270, 2147483648
    %v349 = vxor.u32 %v275, 2147483648
    %v350 = vxor.u32 %v280, 2147483648
    %v351 = vxor.u32 %v285, 2147483648
    %v352 = vxor.u32 %v290, 2147483648
    %v353 = vxor.u32 %v295, 2147483648
    %v354 = vxor.u32 %v300, 2147483648
    %v355 = vxor.u32 %v305, 2147483648
    %v356 = vxor.u32 %v310, 2147483648
    %v357 = vxor.u32 %v315, 2147483648
    %v358 = vxor.u32 %v320, 2147483648
    %v359 = vxor.u32 %v325, 2147483648
    %v360 = vxor.u32 %v330, 2147483648
    %v361 = vxor.u32 %v335, 2147483648
    %v362 = vxor.u32 %v340, 2147483648
    %v363 = vxor.u32 %v345, 2147483648
    %v364 = vmul.f32 %v348, 1.442695
    %v365 = vpow.pop %v364
    %v366 = vmul.f32 %v349, 1.442695
    %v367 = vpow.pop %v366
    %v368 = vmul.f32 %v350, 1.442695
    %v369 = vpow.pop %v368
    %v370 = vmul.f32 %v351, 1.442695
    %v371 = vpow.pop %v370
    %v372 = vmul.f32 %v352, 1.442695
    %v373 = vpow.pop %v372
    %v374 = vmul.f32 %v353, 1.442695
    %v375 = vpow.pop %v374
    %v376 = vmul.f32 %v354, 1.442695
    %v377 = vpow.pop %v376
    %v378 = vmul.f32 %v355, 1.442695
    %v379 = vpow.pop %v378
    %v380 = vmul.f32 %v356, 1.442695
    %v381 = vpow.pop %v380
    %v382 = vmul.f32 %v357, 1.442695
    %v383 = vpow.pop %v382
    %v384 = vmul.f32 %v358, 1.442695
    %v385 = vpow.pop %v384
    %v386 = vmul.f32 %v359, 1.442695
    %v387 = vpow.pop %v386
    %v388 = vmul.f32 %v360, 1.442695
    %v389 = vpow.pop %v388
    %v390 = vmul.f32 %v361, 1.442695
    %v391 = vpow.pop %v390
    %v392 = vmul.f32 %v362, 1.442695
    %v393 = vpow.pop %v392
    %v394 = vmul.f32 %v363, 1.442695
    %v395 = vpow.pop %v394
    %v396 = vadd.f32 %v365, 1.0
    %v397 = vadd.f32 %v367, 1.0
    %v398 = vadd.f32 %v369, 1.0
    %v399 = vadd.f32 %v371, 1.0
    %v400 = vadd.f32 %v373, 1.0
    %v401 = vadd.f32 %v375, 1.0
    %v402 = vadd.f32 %v377, 1.0
    %v403 = vadd.f32 %v379, 1.0
    %v404 = vadd.f32 %v381, 1.0
    %v405 = vadd.f32 %v383, 1.0
    %v406 = vadd.f32 %v385, 1.0
    %v407 = vadd.f32 %v387, 1.0
    %v408 = vadd.f32 %v389, 1.0
    %v409 = vadd.f32 %v391, 1.0
    %v410 = vadd.f32 %v393, 1.0
    %v411 = vadd.f32 %v395, 1.0
    %v412 = vrcp.pop %v396
    %v413 = vmul.f32 1.0, %v412
    %v414 = vrcp.pop %v397
    %v415 = vmul.f32 1.0, %v414
    %v416 = vrcp.pop %v398
    %v417 = vmul.f32 1.0, %v416
    %v418 = vrcp.pop %v399
    %v419 = vmul.f32 1.0, %v418
    %v420 = vrcp.pop %v400
    %v421 = vmul.f32 1.0, %v420
    %v422 = vrcp.pop %v401
    %v423 = vmul.f32 1.0, %v422
    %v424 = vrcp.pop %v402
    %v425 = vmul.f32 1.0, %v424
    %v426 = vrcp.pop %v403
    %v427 = vmul.f32 1.0, %v426
    %v428 = vrcp.pop %v404
    %v429 = vmul.f32 1.0, %v428
    %v430 = vrcp.pop %v405
    %v431 = vmul.f32 1.0, %v430
    %v432 = vrcp.pop %v406
    %v433 = vmul.f32 1.0, %v432
    %v434 = vrcp.pop %v407
    %v435 = vmul.f32 1.0, %v434
    %v436 = vrcp.pop %v408
    %v437 = vmul.f32 1.0, %v436
    %v438 = vrcp.pop %v409
    %v439 = vmul.f32 1.0, %v438
    %v440 = vrcp.pop %v410
    %v441 = vmul.f32 1.0, %v440
    %v442 = vrcp.pop %v411
    %v443 = vmul.f32 1.0, %v442
    %v444 = vpack.c.bf16 %v415, %v413
    %v445 = vpack.c.bf16 %v419, %v417
    %v446 = vpack.c.bf16 %v423, %v421
    %v447 = vpack.c.bf16 %v427, %v425
    %v448 = vpack.c.bf16 %v431, %v429
    %v449 = vpack.c.bf16 %v435, %v433
    %v450 = vpack.c.bf16 %v439, %v437
    %v451 = vpack.c.bf16 %v443, %v441
    %v452 = vld [vmem:[%s2] sm:$0xf]
    %v453 = vld [vmem:[%s2 + $0x4] sm:$0xf]
    %v454 = vld [vmem:[%s2 + $0x8] sm:$0xf]
    %v455 = vld [vmem:[%s2 + $0xc] sm:$0xf]
    %v456 = vld [vmem:[%s2 + $0x10] sm:$0xf]
    %v457 = vld [vmem:[%s2 + $0x14] sm:$0xf]
    %v458 = vld [vmem:[%s2 + $0x18] sm:$0xf]
    %v459 = vld [vmem:[%s2 + $0x1c] sm:$0xf]
    %460 = vset.pattern.permute.xlu0 1
    %461 = vperm.xlu0 %460, %v36
    %v462 = vpop.permute.xlu0 %461
    %464 = vset.pattern.permute.xlu0 1
    %465 = vperm.xlu0 %464, %v37
    %v466 = vpop.permute.xlu0 %465
    %468 = vset.pattern.permute.xlu0 1
    %469 = vperm.xlu0 %468, %v38
    %v470 = vpop.permute.xlu0 %469
    %472 = vset.pattern.permute.xlu0 1
    %473 = vperm.xlu0 %472, %v39
    %v474 = vpop.permute.xlu0 %473
    %476 = vset.pattern.permute.xlu0 1
    %477 = vperm.xlu0 %476, %v40
    %v478 = vpop.permute.xlu0 %477
    %480 = vset.pattern.permute.xlu0 1
    %481 = vperm.xlu0 %480, %v41
    %v482 = vpop.permute.xlu0 %481
    %484 = vset.pattern.permute.xlu0 1
    %485 = vperm.xlu0 %484, %v42
    %v486 = vpop.permute.xlu0 %485
    %488 = vset.pattern.permute.xlu0 1
    %489 = vperm.xlu0 %488, %v43
    %v490 = vpop.permute.xlu0 %489
    %v500 = vunpack.c.l.b16 %v452
    %v501 = vunpack.c.l.b16 %v453
    %v502 = vunpack.c.l.b16 %v454
    %v503 = vunpack.c.l.b16 %v455
    %v504 = vunpack.c.l.b16 %v456
    %v505 = vunpack.c.l.b16 %v457
    %v506 = vunpack.c.l.b16 %v458
    %v507 = vunpack.c.l.b16 %v459
    %v508 = vpack.c.b16 %v501, %v500
    %v509 = vpack.c.b16 %v503, %v502
    %v510 = vpack.c.b16 %v505, %v504
    %v511 = vpack.c.b16 %v507, %v506
    %vm512 = vcmask 523264
    %v514 = vsel %vm512, %v508, 0
    %v517 = vsel %vm512, %v509, 0
    %v520 = vsel %vm512, %v510, 0
    %v523 = vsel %vm512, %v511, 0
    %525 = vmatprep.subr.bf16.mxu0 0
    %526 = vmatpush1.bf16.msra.mxu0 %v444
    %527 = vmatprep.subr.bf16.mxu0 0
    %528 = vmatpush1.bf16.msra.mxu0 %v445
    %529 = vmatprep.subr.bf16.mxu0 0
    %530 = vmatpush1.bf16.msra.mxu0 %v446
    %531 = vmatprep.subr.bf16.mxu0 0
    %532 = vmatpush1.bf16.msra.mxu0 %v447
    %533 = vmatprep.subr.bf16.mxu0 0
    %534 = vmatpush1.bf16.msra.mxu0 0
    %535 = vmatprep.subr.bf16.mxu0 0
    %536 = vmatpush1.bf16.msra.mxu0 0
    %537 = vmatprep.subr.bf16.mxu0 0
    %538 = vmatpush1.bf16.msra.mxu0 0
    %539 = vmatprep.subr.bf16.mxu0 0
    %540 = vmatpush1.bf16.msra.mxu0 0
    %541 = vmatprep.subr.bf16.mxu0 0
    %542 = vmatpush1.bf16.msra.mxu0 0
    %543 = vmatprep.subr.bf16.mxu0 0
    %544 = vmatpush1.bf16.msra.mxu0 0
    %545 = vmatprep.subr.bf16.mxu0 0
    %546 = vmatpush1.bf16.msra.mxu0 0
    %547 = vmatprep.subr.bf16.mxu0 0
    %548 = vmatpush1.bf16.msra.mxu0 0
    %549 = vmatprep.subr.bf16.mxu0 0
    %550 = vmatpush1.bf16.msra.mxu0 0
    %551 = vmatprep.subr.bf16.mxu0 0
    %552 = vmatpush1.bf16.msra.mxu0 0
    %553 = vmatprep.subr.bf16.mxu0 0
    %554 = vmatpush1.bf16.msra.mxu0 0
    %555 = vmatprep.subr.bf16.mxu0 0
    %556 = vmatpush1.bf16.msra.mxu0 0
    %557 = vmatprep.mubr.bf16.mxu0 0
    %558 = vmatmul.mubr.bf16.gmra.mrb[0].mxu0 %v514
    %v559 = vpop.f32.mrb[0].mxu0
    %v560 = vadd.f32 %v462, %v559
    %v561 = vpop.f32.mrb[0].mxu0
    %v562 = vpop.f32.mrb[0].mxu0
    %v563 = vadd.f32 %v466, %v562
    %v564 = vpop.f32.mrb[0].mxu0
    %565 = vmatprep.mubr.bf16.mxu0 0
    %566 = vmatmul.mubr.bf16.gmra.mrb[0].mxu0 %v517
    %v567 = vpop.f32.mrb[0].mxu0
    %v568 = vadd.f32 %v470, %v567
    %v569 = vpop.f32.mrb[0].mxu0
    %v570 = vpop.f32.mrb[0].mxu0
    %v571 = vadd.f32 %v474, %v570
    %v572 = vpop.f32.mrb[0].mxu0
    %573 = vmatprep.mubr.bf16.mxu0 0
    %574 = vmatmul.mubr.bf16.gmra.mrb[0].mxu0 %v520
    %v575 = vpop.f32.mrb[0].mxu0
    %v576 = vadd.f32 %v478, %v575
    %v577 = vpop.f32.mrb[0].mxu0
    %v578 = vpop.f32.mrb[0].mxu0
    %v579 = vadd.f32 %v482, %v578
    %v580 = vpop.f32.mrb[0].mxu0
    %581 = vmatprep.mubr.bf16.mxu0 0
    %582 = vmatmul.mubr.bf16.gmra.mrb[0].mxu0 %v523
    %v583 = vpop.f32.mrb[0].mxu0
    %v584 = vadd.f32 %v486, %v583
    %v585 = vpop.f32.mrb[0].mxu0
    %v586 = vpop.f32.mrb[0].mxu0
    %v587 = vadd.f32 %v490, %v586
    %v588 = vpop.f32.mrb[0].mxu0
    %589 = vdwg.mxu0
    %v590 = vld [vmem:[%s3] sm:$0xf]
    %v591 = vld [vmem:[%s3 + $0x4] sm:$0xf]
    %v592 = vld [vmem:[%s3 + $0x8] sm:$0xf]
    %v593 = vld [vmem:[%s3 + $0xc] sm:$0xf]
    %v594 = vld [vmem:[%s3 + $0x10] sm:$0xf]
    %v595 = vld [vmem:[%s3 + $0x14] sm:$0xf]
    %v596 = vld [vmem:[%s3 + $0x18] sm:$0xf]
    %v597 = vld [vmem:[%s3 + $0x1c] sm:$0xf]
    %598 = vset.pattern.permute.xlu0 1
    %599 = vperm.xlu0 %598, %v44
    %v600 = vpop.permute.xlu0 %599
    %602 = vset.pattern.permute.xlu0 1
    %603 = vperm.xlu0 %602, %v45
    %v604 = vpop.permute.xlu0 %603
    %606 = vset.pattern.permute.xlu0 1
    %607 = vperm.xlu0 %606, %v46
    %v608 = vpop.permute.xlu0 %607
    %610 = vset.pattern.permute.xlu0 1
    %611 = vperm.xlu0 %610, %v47
    %v612 = vpop.permute.xlu0 %611
    %614 = vset.pattern.permute.xlu0 1
    %615 = vperm.xlu0 %614, %v48
    %v616 = vpop.permute.xlu0 %615
    %618 = vset.pattern.permute.xlu0 1
    %619 = vperm.xlu0 %618, %v49
    %v620 = vpop.permute.xlu0 %619
    %622 = vset.pattern.permute.xlu0 1
    %623 = vperm.xlu0 %622, %v50
    %v624 = vpop.permute.xlu0 %623
    %626 = vset.pattern.permute.xlu0 1
    %627 = vperm.xlu0 %626, %v51
    %v628 = vpop.permute.xlu0 %627
    %v638 = vunpack.c.l.b16 %v590
    %v639 = vunpack.c.l.b16 %v591
    %v640 = vunpack.c.l.b16 %v592
    %v641 = vunpack.c.l.b16 %v593
    %v642 = vunpack.c.l.b16 %v594
    %v643 = vunpack.c.l.b16 %v595
    %v644 = vunpack.c.l.b16 %v596
    %v645 = vunpack.c.l.b16 %v597
    %v646 = vpack.c.b16 %v639, %v638
    %v647 = vpack.c.b16 %v641, %v640
    %v648 = vpack.c.b16 %v643, %v642
    %v649 = vpack.c.b16 %v645, %v644
    %v651 = vsel %vm512, %v646, 0
    %v654 = vsel %vm512, %v647, 0
    %v657 = vsel %vm512, %v648, 0
    %v660 = vsel %vm512, %v649, 0
    %662 = vmatprep.subr.bf16.mxu0 0
    %663 = vmatpush1.bf16.msra.mxu0 %v448
    %664 = vmatprep.subr.bf16.mxu0 0
    %665 = vmatpush1.bf16.msra.mxu0 %v449
    %666 = vmatprep.subr.bf16.mxu0 0
    %667 = vmatpush1.bf16.msra.mxu0 %v450
    %668 = vmatprep.subr.bf16.mxu0 0
    %669 = vmatpush1.bf16.msra.mxu0 %v451
    %670 = vmatprep.subr.bf16.mxu0 0
    %671 = vmatpush1.bf16.msra.mxu0 0
    %672 = vmatprep.subr.bf16.mxu0 0
    %673 = vmatpush1.bf16.msra.mxu0 0
    %674 = vmatprep.subr.bf16.mxu0 0
    %675 = vmatpush1.bf16.msra.mxu0 0
    %676 = vmatprep.subr.bf16.mxu0 0
    %677 = vmatpush1.bf16.msra.mxu0 0
    %678 = vmatprep.subr.bf16.mxu0 0
    %679 = vmatpush1.bf16.msra.mxu0 0
    %680 = vmatprep.subr.bf16.mxu0 0
    %681 = vmatpush1.bf16.msra.mxu0 0
    %682 = vmatprep.subr.bf16.mxu0 0
    %683 = vmatpush1.bf16.msra.mxu0 0
    %684 = vmatprep.subr.bf16.mxu0 0
    %685 = vmatpush1.bf16.msra.mxu0 0
    %686 = vmatprep.subr.bf16.mxu0 0
    %687 = vmatpush1.bf16.msra.mxu0 0
    %688 = vmatprep.subr.bf16.mxu0 0
    %689 = vmatpush1.bf16.msra.mxu0 0
    %690 = vmatprep.subr.bf16.mxu0 0
    %691 = vmatpush1.bf16.msra.mxu0 0
    %692 = vmatprep.subr.bf16.mxu0 0
    %693 = vmatpush1.bf16.msra.mxu0 0
    %694 = vmatprep.mubr.bf16.mxu0 0
    %695 = vmatmul.mubr.bf16.gmra.mrb[0].mxu0 %v651
    %v696 = vpop.f32.mrb[0].mxu0
    %v697 = vadd.f32 %v600, %v696
    %v698 = vpop.f32.mrb[0].mxu0
    %v699 = vpop.f32.mrb[0].mxu0
    %v700 = vadd.f32 %v604, %v699
    %v701 = vpop.f32.mrb[0].mxu0
    %702 = vmatprep.mubr.bf16.mxu0 0
    %703 = vmatmul.mubr.bf16.gmra.mrb[0].mxu0 %v654
    %v704 = vpop.f32.mrb[0].mxu0
    %v705 = vadd.f32 %v608, %v704
    %v706 = vpop.f32.mrb[0].mxu0
    %v707 = vpop.f32.mrb[0].mxu0
    %v708 = vadd.f32 %v612, %v707
    %v709 = vpop.f32.mrb[0].mxu0
    %710 = vmatprep.mubr.bf16.mxu0 0
    %711 = vmatmul.mubr.bf16.gmra.mrb[0].mxu0 %v657
    %v712 = vpop.f32.mrb[0].mxu0
    %v713 = vadd.f32 %v616, %v712
    %v714 = vpop.f32.mrb[0].mxu0
    %v715 = vpop.f32.mrb[0].mxu0
    %v716 = vadd.f32 %v620, %v715
    %v717 = vpop.f32.mrb[0].mxu0
    %718 = vmatprep.mubr.bf16.mxu0 0
    %719 = vmatmul.mubr.bf16.gmra.mrb[0].mxu0 %v660
    %v720 = vpop.f32.mrb[0].mxu0
    %v721 = vadd.f32 %v624, %v720
    %v722 = vpop.f32.mrb[0].mxu0
    %v723 = vpop.f32.mrb[0].mxu0
    %v724 = vadd.f32 %v628, %v723
    %v725 = vpop.f32.mrb[0].mxu0
    %726 = vdwg.mxu0
    %v727 = vtanh.pop %v560
    %v728 = vtanh.pop %v563
    %v729 = vtanh.pop %v568
    %v730 = vtanh.pop %v571
    %v731 = vtanh.pop %v576
    %v732 = vtanh.pop %v579
    %v733 = vtanh.pop %v584
    %v734 = vtanh.pop %v587
    %v735 = vpack.c.bf16 %v728, %v727
    %v736 = vpack.c.bf16 %v730, %v729
    %v737 = vpack.c.bf16 %v732, %v731
    %v738 = vpack.c.bf16 %v734, %v733
    %v739 = vmax.f32 %v697, 0.0
    %v740 = vmax.f32 %v700, 0.0
    %v741 = vmax.f32 %v705, 0.0
    %v742 = vmax.f32 %v708, 0.0
    %v743 = vmax.f32 %v713, 0.0
    %v744 = vmax.f32 %v716, 0.0
    %v745 = vmax.f32 %v721, 0.0
    %v746 = vmax.f32 %v724, 0.0
    %v747 = vpack.c.bf16 %v740, %v739
    %v748 = vpack.c.bf16 %v742, %v741
    %v749 = vpack.c.bf16 %v744, %v743
    %v750 = vpack.c.bf16 %v746, %v745
    %v751 = vld [vmem:[%s4] sm:$0xf]
    %v752 = vld [vmem:[%s4 + $0x4] sm:$0xf]
    %v753 = vld [vmem:[%s4 + $0x8] sm:$0xf]
    %v754 = vld [vmem:[%s4 + $0xc] sm:$0xf]
    %v755 = vld [vmem:[%s4 + $0x10] sm:$0xf]
    %v756 = vld [vmem:[%s4 + $0x14] sm:$0xf]
    %v757 = vld [vmem:[%s4 + $0x18] sm:$0xf]
    %v758 = vld [vmem:[%s4 + $0x1c] sm:$0xf]
    %759 = vset.pattern.permute.xlu0 2
    %760 = vperm.xlu0 %759, %v36
    %v761 = vpop.permute.xlu0 %760
    %763 = vset.pattern.permute.xlu0 2
    %764 = vperm.xlu0 %763, %v37
    %v765 = vpop.permute.xlu0 %764
    %767 = vset.pattern.permute.xlu0 2
    %768 = vperm.xlu0 %767, %v38
    %v769 = vpop.permute.xlu0 %768
    %771 = vset.pattern.permute.xlu0 2
    %772 = vperm.xlu0 %771, %v39
    %v773 = vpop.permute.xlu0 %772
    %775 = vset.pattern.permute.xlu0 2
    %776 = vperm.xlu0 %775, %v40
    %v777 = vpop.permute.xlu0 %776
    %779 = vset.pattern.permute.xlu0 2
    %780 = vperm.xlu0 %779, %v41
    %v781 = vpop.permute.xlu0 %780
    %783 = vset.pattern.permute.xlu0 2
    %784 = vperm.xlu0 %783, %v42
    %v785 = vpop.permute.xlu0 %784
    %787 = vset.pattern.permute.xlu0 2
    %788 = vperm.xlu0 %787, %v43
    %v789 = vpop.permute.xlu0 %788
    %v799 = vunpack.c.l.b16 %v751
    %v800 = vunpack.c.l.b16 %v752
    %v801 = vunpack.c.l.b16 %v753
    %v802 = vunpack.c.l.b16 %v754
    %v803 = vunpack.c.l.b16 %v755
    %v804 = vunpack.c.l.b16 %v756
    %v805 = vunpack.c.l.b16 %v757
    %v806 = vunpack.c.l.b16 %v758
    %v807 = vpack.c.b16 %v800, %v799
    %v808 = vpack.c.b16 %v802, %v801
    %v809 = vpack.c.b16 %v804, %v803
    %v810 = vpack.c.b16 %v806, %v805
    %v812 = vsel %vm512, %v807, 0
    %v815 = vsel %vm512, %v808, 0
    %v818 = vsel %vm512, %v809, 0
    %v821 = vsel %vm512, %v810, 0
    %823 = vmatprep.subr.bf16.mxu0 0
    %824 = vmatpush1.bf16.msra.mxu0 %v735
    %825 = vmatprep.subr.bf16.mxu0 0
    %826 = vmatpush1.bf16.msra.mxu0 %v736
    %827 = vmatprep.subr.bf16.mxu0 0
    %828 = vmatpush1.bf16.msra.mxu0 %v737
    %829 = vmatprep.subr.bf16.mxu0 0
    %830 = vmatpush1.bf16.msra.mxu0 %v738
    %831 = vmatprep.subr.bf16.mxu0 0
    %832 = vmatpush1.bf16.msra.mxu0 0
    %833 = vmatprep.subr.bf16.mxu0 0
    %834 = vmatpush1.bf16.msra.mxu0 0
    %835 = vmatprep.subr.bf16.mxu0 0
    %836 = vmatpush1.bf16.msra.mxu0 0
    %837 = vmatprep.subr.bf16.mxu0 0
    %838 = vmatpush1.bf16.msra.mxu0 0
    %839 = vmatprep.subr.bf16.mxu0 0
    %840 = vmatpush1.bf16.msra.mxu0 0
    %841 = vmatprep.subr.bf16.mxu0 0
    %842 = vmatpush1.bf16.msra.mxu0 0
    %843 = vmatprep.subr.bf16.mxu0 0
    %844 = vmatpush1.bf16.msra.mxu0 0
    %845 = vmatprep.subr.bf16.mxu0 0
    %846 = vmatpush1.bf16.msra.mxu0 0
    %847 = vmatprep.subr.bf16.mxu0 0
    %848 = vmatpush1.bf16.msra.mxu0 0
    %849 = vmatprep.subr.bf16.mxu0 0
    %850 = vmatpush1.bf16.msra.mxu0 0
    %851 = vmatprep.subr.bf16.mxu0 0
    %852 = vmatpush1.bf16.msra.mxu0 0
    %853 = vmatprep.subr.bf16.mxu0 0
    %854 = vmatpush1.bf16.msra.mxu0 0
    %855 = vmatprep.mubr.bf16.mxu0 0
    %856 = vmatmul.mubr.bf16.gmra.mrb[0].mxu0 %v812
    %v857 = vpop.f32.mrb[0].mxu0
    %v858 = vadd.f32 %v761, %v857
    %v859 = vpop.f32.mrb[0].mxu0
    %v860 = vpop.f32.mrb[0].mxu0
    %v861 = vadd.f32 %v765, %v860
    %v862 = vpop.f32.mrb[0].mxu0
    %863 = vmatprep.mubr.bf16.mxu0 0
    %864 = vmatmul.mubr.bf16.gmra.mrb[0].mxu0 %v815
    %v865 = vpop.f32.mrb[0].mxu0
    %v866 = vadd.f32 %v769, %v865
    %v867 = vpop.f32.mrb[0].mxu0
    %v868 = vpop.f32.mrb[0].mxu0
    %v869 = vadd.f32 %v773, %v868
    %v870 = vpop.f32.mrb[0].mxu0
    %871 = vmatprep.mubr.bf16.mxu0 0
    %872 = vmatmul.mubr.bf16.gmra.mrb[0].mxu0 %v818
    %v873 = vpop.f32.mrb[0].mxu0
    %v874 = vadd.f32 %v777, %v873
    %v875 = vpop.f32.mrb[0].mxu0
    %v876 = vpop.f32.mrb[0].mxu0
    %v877 = vadd.f32 %v781, %v876
    %v878 = vpop.f32.mrb[0].mxu0
    %879 = vmatprep.mubr.bf16.mxu0 0
    %880 = vmatmul.mubr.bf16.gmra.mrb[0].mxu0 %v821
    %v881 = vpop.f32.mrb[0].mxu0
    %v882 = vadd.f32 %v785, %v881
    %v883 = vpop.f32.mrb[0].mxu0
    %v884 = vpop.f32.mrb[0].mxu0
    %v885 = vadd.f32 %v789, %v884
    %v886 = vpop.f32.mrb[0].mxu0
    %887 = vdwg.mxu0
    %v888 = vld [vmem:[%s5] sm:$0xf]
    %v889 = vld [vmem:[%s5 + $0x4] sm:$0xf]
    %v890 = vld [vmem:[%s5 + $0x8] sm:$0xf]
    %v891 = vld [vmem:[%s5 + $0xc] sm:$0xf]
    %v892 = vld [vmem:[%s5 + $0x10] sm:$0xf]
    %v893 = vld [vmem:[%s5 + $0x14] sm:$0xf]
    %v894 = vld [vmem:[%s5 + $0x18] sm:$0xf]
    %v895 = vld [vmem:[%s5 + $0x1c] sm:$0xf]
    %896 = vset.pattern.permute.xlu0 2
    %897 = vperm.xlu0 %896, %v44
    %v898 = vpop.permute.xlu0 %897
    %900 = vset.pattern.permute.xlu0 2
    %901 = vperm.xlu0 %900, %v45
    %v902 = vpop.permute.xlu0 %901
    %904 = vset.pattern.permute.xlu0 2
    %905 = vperm.xlu0 %904, %v46
    %v906 = vpop.permute.xlu0 %905
    %908 = vset.pattern.permute.xlu0 2
    %909 = vperm.xlu0 %908, %v47
    %v910 = vpop.permute.xlu0 %909
    %912 = vset.pattern.permute.xlu0 2
    %913 = vperm.xlu0 %912, %v48
    %v914 = vpop.permute.xlu0 %913
    %916 = vset.pattern.permute.xlu0 2
    %917 = vperm.xlu0 %916, %v49
    %v918 = vpop.permute.xlu0 %917
    %920 = vset.pattern.permute.xlu0 2
    %921 = vperm.xlu0 %920, %v50
    %v922 = vpop.permute.xlu0 %921
    %924 = vset.pattern.permute.xlu0 2
    %925 = vperm.xlu0 %924, %v51
    %v926 = vpop.permute.xlu0 %925
    %v936 = vunpack.c.l.b16 %v888
    %v937 = vunpack.c.l.b16 %v889
    %v938 = vunpack.c.l.b16 %v890
    %v939 = vunpack.c.l.b16 %v891
    %v940 = vunpack.c.l.b16 %v892
    %v941 = vunpack.c.l.b16 %v893
    %v942 = vunpack.c.l.b16 %v894
    %v943 = vunpack.c.l.b16 %v895
    %v944 = vpack.c.b16 %v937, %v936
    %v945 = vpack.c.b16 %v939, %v938
    %v946 = vpack.c.b16 %v941, %v940
    %v947 = vpack.c.b16 %v943, %v942
    %v949 = vsel %vm512, %v944, 0
    %v952 = vsel %vm512, %v945, 0
    %v955 = vsel %vm512, %v946, 0
    %v958 = vsel %vm512, %v947, 0
    %960 = vmatprep.subr.bf16.mxu0 0
    %961 = vmatpush1.bf16.msra.mxu0 %v747
    %962 = vmatprep.subr.bf16.mxu0 0
    %963 = vmatpush1.bf16.msra.mxu0 %v748
    %964 = vmatprep.subr.bf16.mxu0 0
    %965 = vmatpush1.bf16.msra.mxu0 %v749
    %966 = vmatprep.subr.bf16.mxu0 0
    %967 = vmatpush1.bf16.msra.mxu0 %v750
    %968 = vmatprep.subr.bf16.mxu0 0
    %969 = vmatpush1.bf16.msra.mxu0 0
    %970 = vmatprep.subr.bf16.mxu0 0
    %971 = vmatpush1.bf16.msra.mxu0 0
    %972 = vmatprep.subr.bf16.mxu0 0
    %973 = vmatpush1.bf16.msra.mxu0 0
    %974 = vmatprep.subr.bf16.mxu0 0
    %975 = vmatpush1.bf16.msra.mxu0 0
    %976 = vmatprep.subr.bf16.mxu0 0
    %977 = vmatpush1.bf16.msra.mxu0 0
    %978 = vmatprep.subr.bf16.mxu0 0
    %979 = vmatpush1.bf16.msra.mxu0 0
    %980 = vmatprep.subr.bf16.mxu0 0
    %981 = vmatpush1.bf16.msra.mxu0 0
    %982 = vmatprep.subr.bf16.mxu0 0
    %983 = vmatpush1.bf16.msra.mxu0 0
    %984 = vmatprep.subr.bf16.mxu0 0
    %985 = vmatpush1.bf16.msra.mxu0 0
    %986 = vmatprep.subr.bf16.mxu0 0
    %987 = vmatpush1.bf16.msra.mxu0 0
    %988 = vmatprep.subr.bf16.mxu0 0
    %989 = vmatpush1.bf16.msra.mxu0 0
    %990 = vmatprep.subr.bf16.mxu0 0
    %991 = vmatpush1.bf16.msra.mxu0 0
    %992 = vmatprep.mubr.bf16.mxu0 0
    %993 = vmatmul.mubr.bf16.gmra.mrb[0].mxu0 %v949
    %v994 = vpop.f32.mrb[0].mxu0
    %v995 = vadd.f32 %v898, %v994
    %v996 = vpop.f32.mrb[0].mxu0
    %v997 = vpop.f32.mrb[0].mxu0
    %v998 = vadd.f32 %v902, %v997
    %v999 = vpop.f32.mrb[0].mxu0
    %1000 = vmatprep.mubr.bf16.mxu0 0
    %1001 = vmatmul.mubr.bf16.gmra.mrb[0].mxu0 %v952
    %v1002 = vpop.f32.mrb[0].mxu0
    %v1003 = vadd.f32 %v906, %v1002
    %v1004 = vpop.f32.mrb[0].mxu0
    %v1005 = vpop.f32.mrb[0].mxu0
    %v1006 = vadd.f32 %v910, %v1005
    %v1007 = vpop.f32.mrb[0].mxu0
    %1008 = vmatprep.mubr.bf16.mxu0 0
    %1009 = vmatmul.mubr.bf16.gmra.mrb[0].mxu0 %v955
    %v1010 = vpop.f32.mrb[0].mxu0
    %v1011 = vadd.f32 %v914, %v1010
    %v1012 = vpop.f32.mrb[0].mxu0
    %v1013 = vpop.f32.mrb[0].mxu0
    %v1014 = vadd.f32 %v918, %v1013
    %v1015 = vpop.f32.mrb[0].mxu0
    %1016 = vmatprep.mubr.bf16.mxu0 0
    %1017 = vmatmul.mubr.bf16.gmra.mrb[0].mxu0 %v958
    %v1018 = vpop.f32.mrb[0].mxu0
    %v1019 = vadd.f32 %v922, %v1018
    %v1020 = vpop.f32.mrb[0].mxu0
    %v1021 = vpop.f32.mrb[0].mxu0
    %v1022 = vadd.f32 %v926, %v1021
    %v1023 = vpop.f32.mrb[0].mxu0
    %1024 = vdwg.mxu0
    %v1025 = vtanh.pop %v858
    %v1026 = vtanh.pop %v861
    %v1027 = vtanh.pop %v866
    %v1028 = vtanh.pop %v869
    %v1029 = vtanh.pop %v874
    %v1030 = vtanh.pop %v877
    %v1031 = vtanh.pop %v882
    %v1032 = vtanh.pop %v885
    %v1033 = vmax.f32 %v995, 0.0
    %v1034 = vmax.f32 %v998, 0.0
    %v1035 = vmax.f32 %v1003, 0.0
    %v1036 = vmax.f32 %v1006, 0.0
    %v1037 = vmax.f32 %v1011, 0.0
    %v1038 = vmax.f32 %v1014, 0.0
    %v1039 = vmax.f32 %v1019, 0.0
    %v1040 = vmax.f32 %v1022, 0.0
    %v1041 = vld [vmem:[%s6] sm:$0x1]
    %1043 = vset.pattern.permute.xlu0 3
    %1044 = vperm.xlu0 %1043, %v52
    %v1045 = vpop.permute.xlu0 %1044
    %v1048 = vsel %vm512, %v1041, 0
    %1050 = vmatprep.subr.mxu0 0.0
    %1051 = vmatpush1.msra.mxu0 %v1025
    %1052 = vmatprep.subr.mxu0 0.0
    %1053 = vmatpush1.msra.mxu0 %v1026
    %1054 = vmatprep.subr.mxu0 0.0
    %1055 = vmatpush1.msra.mxu0 %v1027
    %1056 = vmatprep.subr.mxu0 0.0
    %1057 = vmatpush1.msra.mxu0 %v1028
    %1058 = vmatprep.subr.mxu0 0.0
    %1059 = vmatpush1.msra.mxu0 %v1029
    %1060 = vmatprep.subr.mxu0 0.0
    %1061 = vmatpush1.msra.mxu0 %v1030
    %1062 = vmatprep.subr.mxu0 0.0
    %1063 = vmatpush1.msra.mxu0 %v1031
    %1064 = vmatprep.subr.mxu0 0.0
    %1065 = vmatpush1.msra.mxu0 %v1032
    %1066 = vmatprep.subr.mxu0 0.0
    %1067 = vmatpush1.msra.mxu0 0.0
    %1068 = vmatprep.subr.mxu0 0.0
    %1069 = vmatpush1.msra.mxu0 0.0
    %1070 = vmatprep.subr.mxu0 0.0
    %1071 = vmatpush1.msra.mxu0 0.0
    %1072 = vmatprep.subr.mxu0 0.0
    %1073 = vmatpush1.msra.mxu0 0.0
    %1074 = vmatprep.subr.mxu0 0.0
    %1075 = vmatpush1.msra.mxu0 0.0
    %1076 = vmatprep.subr.mxu0 0.0
    %1077 = vmatpush1.msra.mxu0 0.0
    %1078 = vmatprep.subr.mxu0 0.0
    %1079 = vmatpush1.msra.mxu0 0.0
    %1080 = vmatprep.subr.mxu0 0.0
    %1081 = vmatpush1.msra.mxu0 0.0
    %1082 = vmatprep.subr.mxu0 0.0
    %1083 = vmatpush1.msra.mxu0 0.0
    %1084 = vmatprep.subr.mxu0 0.0
    %1085 = vmatpush1.msra.mxu0 0.0
    %1086 = vmatprep.subr.mxu0 0.0
    %1087 = vmatpush1.msra.mxu0 0.0
    %1088 = vmatprep.subr.mxu0 0.0
    %1089 = vmatpush1.msra.mxu0 0.0
    %1090 = vmatprep.subr.mxu0 0.0
    %1091 = vmatpush1.msra.mxu0 0.0
    %1092 = vmatprep.subr.mxu0 0.0
    %1093 = vmatpush1.msra.mxu0 0.0
    %1094 = vmatprep.subr.mxu0 0.0
    %1095 = vmatpush1.msra.mxu0 0.0
    %1096 = vmatprep.subr.mxu0 0.0
    %1097 = vmatpush1.msra.mxu0 0.0
    %1098 = vmatprep.subr.mxu0 0.0
    %1099 = vmatpush1.msra.mxu0 0.0
    %1100 = vmatprep.subr.mxu0 0.0
    %1101 = vmatpush1.msra.mxu0 0.0
    %1102 = vmatprep.subr.mxu0 0.0
    %1103 = vmatpush1.msra.mxu0 0.0
    %1104 = vmatprep.subr.mxu0 0.0
    %1105 = vmatpush1.msra.mxu0 0.0
    %1106 = vmatprep.subr.mxu0 0.0
    %1107 = vmatpush1.msra.mxu0 0.0
    %1108 = vmatprep.subr.mxu0 0.0
    %1109 = vmatpush1.msra.mxu0 0.0
    %1110 = vmatprep.subr.mxu0 0.0
    %1111 = vmatpush1.msra.mxu0 0.0
    %1112 = vmatprep.subr.mxu0 0.0
    %1113 = vmatpush1.msra.mxu0 0.0
    %1114 = vmatprep.mubr.f32.mxu0 0.0
    %1115 = vmatmul.mubr.f32.gmra.mrb[0].mxu0 %v1048
    %v1116 = vpop.f32.mrb[0].mxu0
    %v1117 = vadd.f32 %v1045, %v1116
    %v1118 = vpop.f32.mrb[0].mxu0
    %1119 = vdwg.mxu0
    %v1120 = vld [vmem:[%s7] sm:$0x1]
    %1122 = vset.pattern.permute.xlu0 3
    %1123 = vperm.xlu0 %1122, %v53
    %v1124 = vpop.permute.xlu0 %1123
    %v1127 = vsel %vm512, %v1120, 0
    %1129 = vmatprep.subr.mxu0 0.0
    %1130 = vmatpush1.msra.mxu0 %v1033
    %1131 = vmatprep.subr.mxu0 0.0
    %1132 = vmatpush1.msra.mxu0 %v1034
    %1133 = vmatprep.subr.mxu0 0.0
    %1134 = vmatpush1.msra.mxu0 %v1035
    %1135 = vmatprep.subr.mxu0 0.0
    %1136 = vmatpush1.msra.mxu0 %v1036
    %1137 = vmatprep.subr.mxu0 0.0
    %1138 = vmatpush1.msra.mxu0 %v1037
    %1139 = vmatprep.subr.mxu0 0.0
    %1140 = vmatpush1.msra.mxu0 %v1038
    %1141 = vmatprep.subr.mxu0 0.0
    %1142 = vmatpush1.msra.mxu0 %v1039
    %1143 = vmatprep.subr.mxu0 0.0
    %1144 = vmatpush1.msra.mxu0 %v1040
    %1145 = vmatprep.subr.mxu0 0.0
    %1146 = vmatpush1.msra.mxu0 0.0
    %1147 = vmatprep.subr.mxu0 0.0
    %1148 = vmatpush1.msra.mxu0 0.0
    %1149 = vmatprep.subr.mxu0 0.0
    %1150 = vmatpush1.msra.mxu0 0.0
    %1151 = vmatprep.subr.mxu0 0.0
    %1152 = vmatpush1.msra.mxu0 0.0
    %1153 = vmatprep.subr.mxu0 0.0
    %1154 = vmatpush1.msra.mxu0 0.0
    %1155 = vmatprep.subr.mxu0 0.0
    %1156 = vmatpush1.msra.mxu0 0.0
    %1157 = vmatprep.subr.mxu0 0.0
    %1158 = vmatpush1.msra.mxu0 0.0
    %1159 = vmatprep.subr.mxu0 0.0
    %1160 = vmatpush1.msra.mxu0 0.0
    %1161 = vmatprep.subr.mxu0 0.0
    %1162 = vmatpush1.msra.mxu0 0.0
    %1163 = vmatprep.subr.mxu0 0.0
    %1164 = vmatpush1.msra.mxu0 0.0
    %1165 = vmatprep.subr.mxu0 0.0
    %1166 = vmatpush1.msra.mxu0 0.0
    %1167 = vmatprep.subr.mxu0 0.0
    %1168 = vmatpush1.msra.mxu0 0.0
    %1169 = vmatprep.subr.mxu0 0.0
    %1170 = vmatpush1.msra.mxu0 0.0
    %1171 = vmatprep.subr.mxu0 0.0
    %1172 = vmatpush1.msra.mxu0 0.0
    %1173 = vmatprep.subr.mxu0 0.0
    %1174 = vmatpush1.msra.mxu0 0.0
    %1175 = vmatprep.subr.mxu0 0.0
    %1176 = vmatpush1.msra.mxu0 0.0
    %1177 = vmatprep.subr.mxu0 0.0
    %1178 = vmatpush1.msra.mxu0 0.0
    %1179 = vmatprep.subr.mxu0 0.0
    %1180 = vmatpush1.msra.mxu0 0.0
    %1181 = vmatprep.subr.mxu0 0.0
    %1182 = vmatpush1.msra.mxu0 0.0
    %1183 = vmatprep.subr.mxu0 0.0
    %1184 = vmatpush1.msra.mxu0 0.0
    %1185 = vmatprep.subr.mxu0 0.0
    %1186 = vmatpush1.msra.mxu0 0.0
    %1187 = vmatprep.subr.mxu0 0.0
    %1188 = vmatpush1.msra.mxu0 0.0
    %1189 = vmatprep.subr.mxu0 0.0
    %1190 = vmatpush1.msra.mxu0 0.0
    %1191 = vmatprep.subr.mxu0 0.0
    %1192 = vmatpush1.msra.mxu0 0.0
    %1193 = vmatprep.mubr.f32.mxu0 0.0
    %1194 = vmatmul.mubr.f32.gmra.mrb[0].mxu0 %v1127
    %v1195 = vpop.f32.mrb[0].mxu0
    %v1196 = vadd.f32 %v1124, %v1195
    %v1197 = vpop.f32.mrb[0].mxu0
    %1198 = vdwg.mxu0
    %v1199 = vtanh.pop %v1117
    %v1200 = vtanh.pop %v1196
    %v1202 = vrot.slane %v34, 1
    %v1204 = vsub.f32 %v34, %v1202
    %v1205 = vmul.f32 %v1204, 0.5
    %v1207 = vrot.slane %v1199, 5
    %v1209 = vmul.f32 %v1205, %v1207
    %v1210 = vadd.f32 %v34, %v1202
    %v1211 = vmul.f32 %v1210, 0.5
    %v1212 = vadd.f32 %v1209, %v1211
    %v1214 = vrot.slane %v1200, 3
    %v1216 = vmul.f32 %v1205, %v1214
    %v1217 = vadd.f32 %v1216, %v1211
    %v1218 = vrot.slane %v34, 5
    %v1220 = vmul.f32 %v1217, %v1218
    %v1222 = vrot.slane %v1220, 2
    %v1224 = vadd.f32 %v1212, %v1222
    %vm1225 = vcmask 60419
    %1226 = vst.msk [vmem:[#allocation2 - $0x3] sm:$0x8] %vm1225, %v1224
    // Predicated region
    $region38: #{tpu_custom_call.1} parent=1 // pred_check
      _
    $region39: #{tpu_custom_call.1} parent=1 // pred_check_branch
      %1228 = sbr.rel (0) target = $region41
    $region40: #{tpu_custom_call.1} parent=1 // pred_region
      %s1230 = ssub.s32 16, 16
      %1231 = vsyncadd [#allocation3], %s1230
      %s1233 = sshll.u32 [#allocation2], 4
      %s1234 = int_to_ptr.vmem [resolvable:$true] %s1233
      %1236 = dma.vmem_to_hbm [thread:$0]  %s1234, 16, %s9, [#allocation3]
    $region41: #{tpu_custom_call.1} parent=1 // pred_fallthru
      _
    // Predicated region
    $region42: #{tpu_custom_call.1} parent=1 // pred_check
      _
    $region43: #{tpu_custom_call.1} parent=1 // pred_check_branch
      %1238 = sbr.rel (0) target = $region45
    $region44: #{tpu_custom_call.1} parent=1 // pred_region
      %1239 = dma.done [#allocation3], 16
    $region45: #{tpu_custom_call.1} parent=1 // pred_fallthru
      _
    %1240 = vsyncpa [#allocation3], 1

</llo_original>
